<compile_context>
chip_gen: v7x
topology: tpu7x:2x2x1
jax: 0.10.0
libtpu: 0.0.40
codegen_flags: <defaults>
</compile_context>

<pallas_src>
import math
import functools

import jax
import jax.numpy as jnp
from jax import lax
from jax.experimental import pallas as pl
from jax.experimental.pallas import tpu as pltpu


# ---------------------------------------------------------------------------
# Parameter / buffer setup (plain JAX glue) — matches PyTorch __init__.
# ---------------------------------------------------------------------------
def make_positional_table(max_len: int, d_model: int, dtype=jnp.float32):
    position = jnp.arange(max_len, dtype=jnp.float32)[:, None]          # [max_len, 1]
    div_term = jnp.exp(
        jnp.arange(0, d_model, 2, dtype=jnp.float32) * (-math.log(10000.0) / d_model)
    )                                                                    # [d_model/2]
    angles = position * div_term                                         # [max_len, d_model/2]
    pe = jnp.zeros((max_len, d_model), dtype=jnp.float32)
    pe = pe.at[:, 0::2].set(jnp.sin(angles))
    pe = pe.at[:, 1::2].set(jnp.cos(angles))
    return pe.astype(dtype)


# ---------------------------------------------------------------------------
# Kernels
# ---------------------------------------------------------------------------
def _pe_add_kernel(x_ref, pe_ref, o_ref, *, batch):
    # x_ref/o_ref: (ts, B*D), pe_ref: (ts, D).  Broadcast pe over batch along
    # the lane axis (concat of B copies == repeat per batch chunk).
    pe_tile = pe_ref[...]
    if batch > 1:
        pe_tile = jnp.concatenate([pe_tile] * batch, axis=-1)
    o_ref[...] = x_ref[...] + pe_tile


def _pe_add_dropout_kernel(seed_ref, x_ref, pe_ref, o_ref, *,
                           batch, keep_threshold, scale):
    rows, cols = x_ref.shape                     # static block shape (ts, B*D)
    pe_tile = pe_ref[...]
    if batch > 1:
        pe_tile = jnp.concatenate([pe_tile] * batch, axis=-1)
    y = x_ref[...] + pe_tile

    # Portable counter-based PRNG: lowbias32-style hash of the global element
    # index mixed with the seed.  Pure 32-bit VPU ops -> lowers on Mosaic and
    # in interpret mode; grid steps are independent (safe for "parallel").
    row0 = pl.program_id(0) * rows
    r = lax.broadcasted_iota(jnp.int32, (rows, cols), 0)
    c = lax.broadcasted_iota(jnp.int32, (rows, cols), 1)
    idx = ((row0 + r) * cols + c).astype(jnp.uint32)
    h = idx ^ seed_ref[0].astype(jnp.uint32)
    h = (h ^ (h >> 16)) * jnp.uint32(0x7FEB352D)
    h = (h ^ (h >> 15)) * jnp.uint32(0x846CA68B)
    h = h ^ (h >> 16)
    keep = h >= jnp.uint32(keep_threshold)       # drop prob = keep_threshold / 2^32

    o_ref[...] = jnp.where(keep, y * scale, jnp.zeros_like(y))


# ---------------------------------------------------------------------------
# Tiling helpers
# ---------------------------------------------------------------------------
def _choose_seq_tile(S, row_bytes, target_bytes=2 << 20, min_steps=8):
    """Seq tile: ~target_bytes per x block, multiple of 8 sublanes, and try to
    expose >= min_steps grid steps for pipelining / megacore sharding."""
    if S <= 8:
        return S
    ts = target_bytes // max(row_bytes, 1)
    ts = min(ts, pl.cdiv(S, min_steps))
    ts = max(8, (ts // 8) * 8)
    return int(min(ts, S))


# ---------------------------------------------------------------------------
# Wrapper
# ---------------------------------------------------------------------------
def positional_encoding_forward(
    x: jax.Array,            # [S, B, D]
    pe_table: jax.Array,     # [max_len, D]
    *,
    p: float = 0.1,
    training: bool = False,
    seed: int = 0,
    seq_tile: int | None = None,
):
    S, B, D = x.shape
    dtype = x.dtype
    itemsize = jnp.dtype(dtype).itemsize

    pe = pe_table[:S].astype(dtype)        # (S, D), cast so no f32 promotion
    x2 = x.reshape(S, B * D)               # free reshape (contiguous)

    row_bytes = B * D * itemsize
    if seq_tile is None:
        ts = _choose_seq_tile(S, row_bytes)
    else:
        ts = max(1, min(int(seq_tile), S))
    grid = (pl.cdiv(S, ts),)

    # index_maps receive (*grid_idx, *scalar_prefetch_refs)
    x_spec = pl.BlockSpec((ts, B * D), lambda i, *_: (i, 0))
    pe_spec = pl.BlockSpec((ts, D), lambda i, *_: (i, 0))
    out_spec = pl.BlockSpec((ts, B * D), lambda i, *_: (i, 0))
    out_shape = jax.ShapeDtypeStruct((S, B * D), dtype)

    # Explicit VMEM budget: double-buffered x + out blocks, pe, plus headroom.
    blk_x = ts * B * D * itemsize
    blk_pe = ts * D * itemsize
    vmem_limit = 4 * blk_x + 2 * blk_pe + (8 << 20)
    vmem_limit = int(min(max(vmem_limit, 16 << 20), 40 << 20))

    cparams = pltpu.CompilerParams(
        dimension_semantics=("parallel",),
        vmem_limit_bytes=vmem_limit,
    )

    if (not training) or p == 0.0:
        out2 = pl.pallas_call(
            functools.partial(_pe_add_kernel, batch=B),
            out_shape=out_shape,
            grid_spec=pltpu.PrefetchScalarGridSpec(
                num_scalar_prefetch=0,
                grid=grid,
                in_specs=[x_spec, pe_spec],
                out_specs=out_spec,
            ),
            compiler_params=cparams,
        )(x2, pe)
        return out2.reshape(S, B, D)

    if p < 0.0 or p > 1.0:
        raise ValueError(f"dropout probability must be in [0, 1], got {p}")
    if p >= 1.0:
        # torch.nn.Dropout(p=1.0) zeroes everything.
        return jnp.zeros_like(x)

    keep_threshold = min(int(round(p * (2.0 ** 32))), 2 ** 32 - 1)
    scale = 1.0 / (1.0 - p)
    seed_arr = jnp.asarray([seed], dtype=jnp.int32)

    out2 = pl.pallas_call(
        functools.partial(
            _pe_add_dropout_kernel,
            batch=B, keep_threshold=keep_threshold, scale=scale,
        ),
        out_shape=out_shape,
        grid_spec=pltpu.PrefetchScalarGridSpec(
            num_scalar_prefetch=1,
            grid=grid,
            in_specs=[x_spec, pe_spec],
            out_specs=out_spec,
        ),
        compiler_params=cparams,
    )(seed_arr, x2, pe)
    return out2.reshape(S, B, D)


# ---------------------------------------------------------------------------
# Demo / self-check
# ---------------------------------------------------------------------------
if __name__ == "__main__":
    key = jax.random.PRNGKey(0)

    seq_len, batch, d_model = 8, 2, 32
    max_len = 64  # small synthetic table (PyTorch default is 5000)
    drop_p = 0.1

    x = jax.random.normal(key, (seq_len, batch, d_model), dtype=jnp.float32)
    pe_table = make_positional_table(max_len, d_model)

    # Reference for the deterministic part: x + pe[:S][:, None, :]
    ref = x + pe_table[:seq_len][:, None, :]

    # Eval-mode forward (dropout is identity, matching module.eval()).
    out = positional_encoding_forward(x, pe_table, p=drop_p, training=False)
    out = jax.block_until_ready(out)
    assert out.shape == (seq_len, batch, d_model)
    assert out.dtype == x.dtype
    assert jnp.allclose(out, ref, atol=1e-6, rtol=1e-6)

    # Training-mode forward (in-kernel hash-PRNG dropout, inverted scaling).
    out_tr = positional_encoding_forward(
        x, pe_table, p=drop_p, training=True, seed=1234
    )
    out_tr = jax.block_until_ready(out_tr)
    assert out_tr.shape == (seq_len, batch, d_model)
    assert out_tr.dtype == x.dtype
    # Every kept element must equal (x + pe) / (1 - p); dropped ones are 0.
    scale = 1.0 / (1.0 - drop_p)
    kept = out_tr != 0.0
    assert jnp.allclose(
        jnp.where(kept, out_tr, 0.0),
        jnp.where(kept, ref * scale, 0.0),
        atol=1e-5, rtol=1e-5,
    )

    print("KERNEL_OK")
</pallas_src>

<mosaic_0001>
module attributes {stable_mosaic.version = 11 : i64} {
  func.func @_pe_add_kernel(%arg0: i32, %arg1: memref<8x64xf32, #tpu.memory_space<vmem>>, %arg2: memref<8x32xf32, #tpu.memory_space<vmem>>, %arg3: memref<8x64xf32, #tpu.memory_space<vmem>>) attributes {dimension_semantics = [#tpu.dimension_semantics<parallel>], iteration_bounds = array<i64: 1>, scalar_prefetch = 0 : i64, scratch_operands = 0 : i64, tpu.core_type = #tpu.core_type<tc>, window_params = [{transform_indices = @transform_0, window_bounds = array<i64: 8, 64>}, {transform_indices = @transform_1, window_bounds = array<i64: 8, 32>}, {transform_indices = @transform_2, window_bounds = array<i64: 8, 64>}]} {
    %c0 = arith.constant 0 : index
    %c0_0 = arith.constant 0 : index
    %0 = vector.load %arg2[%c0, %c0_0] : memref<8x32xf32, #tpu.memory_space<vmem>>, vector<8x32xf32>
    %1 = tpu.concatenate %0, %0 in 1 : vector<8x32xf32>, vector<8x32xf32> -> vector<8x64xf32>
    %c0_1 = arith.constant 0 : index
    %c0_2 = arith.constant 0 : index
    %2 = vector.load %arg1[%c0_1, %c0_2] : memref<8x64xf32, #tpu.memory_space<vmem>>, vector<8x64xf32>
    %3 = arith.addf %2, %1 : vector<8x64xf32>
    %c0_3 = arith.constant 0 : index
    %c0_4 = arith.constant 0 : index
    %4 = vector.load %arg3[%c0_3, %c0_4] : memref<8x64xf32, #tpu.memory_space<vmem>>, vector<8x64xf32>
    tpu.vector_store %arg3[%c0_3, %c0_4], %3 {strides = array<i32>} : memref<8x64xf32, #tpu.memory_space<vmem>>, vector<8x64xf32>,
    return
  }
  func.func @transform_0(%arg0: i32) -> (i32, i32) {
    %c0_i32 = arith.constant 0 : i32
    %c0_i32_0 = arith.constant 0 : i32
    return %arg0, %c0_i32 : i32, i32
  }
  func.func @transform_1(%arg0: i32) -> (i32, i32) {
    %c0_i32 = arith.constant 0 : i32
    %c0_i32_0 = arith.constant 0 : i32
    return %arg0, %c0_i32 : i32, i32
  }
  func.func @transform_2(%arg0: i32) -> (i32, i32) {
    %c0_i32 = arith.constant 0 : i32
    %c0_i32_0 = arith.constant 0 : i32
    return %arg0, %c0_i32 : i32, i32
  }
}

</mosaic_0001>

<llo_original>
// kernel: tpu_custom_call.1
$region0: #{tpu_custom_call.1}
  #allocation0 [shape = 'u32[]', space=smem, size = 0x4, offset = 0x4, fixed_abs, tag = 'smem constant byte address 0x4 - core index']
  #allocation1 [shape = 'u32[144,128]{1,0:T(1,128)}', space=vmem, size = 0x12000, scoped, tag = 'internal scratch']
  %s0 = inlined_call_operand.hbm [shape: f32[8,64], index: 0, kind: input, shape index: {}]
  %s1 = inlined_call_operand.hbm [shape: f32[8,32], index: 1, kind: input, shape index: {}]
  %s2 = inlined_call_operand.hbm [shape: f32[8,64], index: 2, kind: output, shape index: {}]
  %s3 = sld [smem:[#allocation0]]
  $region26: #{tpu_custom_call.1} parent=0
    _
  %s5 = ssub.s32 1, %s3
  %s6 = scalar_select 0, %s5, %s3
  $region1: #{tpu_custom_call.1} parent=0
    #allocation2 [shape = 'u8[4096]{0}', space=vmem, size = 0x1000, scoped, tag = 'input window, operand 0, single buffered']
    #allocation3 [shape = 's32[1]{0}', space=sflag, size = 0x4, scoped, tag = 'scoped memory for tpu_custom_call.1']
    #allocation4 [shape = 's32[1]{0}', space=sflag, size = 0x4, scoped, tag = 'scoped memory for tpu_custom_call.1']
    #allocation5 [shape = 'u8[4096]{0}', space=vmem, size = 0x1000, scoped, tag = 'input window, operand 1, single buffered']
    #allocation6 [shape = 's32[1]{0}', space=sflag, size = 0x4, scoped, tag = 'scoped memory for tpu_custom_call.1']
    #allocation7 [shape = 'u8[4096]{0}', space=vmem, size = 0x1000, scoped, tag = 'output window, operand 0, single buffered']
    %7 = vsyncpa [#allocation3], 0
    %8 = vsyncpa [#allocation6], 0
    %9 = vsyncpa [#allocation4], 0
    // Predicated region
    $region2: #{tpu_custom_call.1} parent=1 // pred_check
      _
    $region3: #{tpu_custom_call.1} parent=1 // pred_check_branch
      %11 = sbr.rel (0) target = $region5
    $region4: #{tpu_custom_call.1} parent=1 // pred_region
      %s13 = ssub.s32 128, 128
      %14 = vsyncadd [#allocation3], %s13
      %s16 = sshll.u32 [#allocation2], 4
      %s17 = int_to_ptr.vmem [resolvable:$true] %s16
      %19 = dma.hbm_to_vmem [thread:$0]  %s0, 128, %s17, [#allocation3]
    $region5: #{tpu_custom_call.1} parent=1 // pred_fallthru
      _
    // Predicated region
    $region6: #{tpu_custom_call.1} parent=1 // pred_check
      _
    $region7: #{tpu_custom_call.1} parent=1 // pred_check_branch
      %21 = sbr.rel (0) target = $region9
    $region8: #{tpu_custom_call.1} parent=1 // pred_region
      %s23 = ssub.s32 128, 128
      %24 = vsyncadd [#allocation6], %s23
      %s26 = sshll.u32 [#allocation5], 4
      %s27 = int_to_ptr.vmem [resolvable:$true] %s26
      %29 = dma.hbm_to_vmem [thread:$0]  %s1, 128, %s27, [#allocation6]
    $region9: #{tpu_custom_call.1} parent=1 // pred_fallthru
      _
    // Predicated region
    $region10: #{tpu_custom_call.1} parent=1 // pred_check
      _
    $region11: #{tpu_custom_call.1} parent=1 // pred_check_branch
      %31 = sbr.rel (0) target = $region13
    $region12: #{tpu_custom_call.1} parent=1 // pred_region
      %32 = dma.done [#allocation3], 128
    $region13: #{tpu_custom_call.1} parent=1 // pred_fallthru
      _
    // Predicated region
    $region14: #{tpu_custom_call.1} parent=1 // pred_check
      _
    $region15: #{tpu_custom_call.1} parent=1 // pred_check_branch
      %34 = sbr.rel (0) target = $region17
    $region16: #{tpu_custom_call.1} parent=1 // pred_region
      %35 = dma.done [#allocation6], 128
    $region17: #{tpu_custom_call.1} parent=1 // pred_fallthru
      _
    %v36 = vld [vmem:[#allocation5] sm:$0xff]
    %38 = vrot.lane.b32.xlu0 %v36, 32
    %v39 = vpop.permute.xlu0 %38
    %vm41 = vcmask 261120
    %v42 = vsel %vm41, %v36, %v39
    %v43 = vld [vmem:[#allocation2] sm:$0xff]
    %v44 = vadd.f32 %v43, %v42
    %vm45 = vcmask 523264
    %46 = vst.msk [vmem:[#allocation7] sm:$0xff] %vm45, %v44
    // Predicated region
    $region18: #{tpu_custom_call.1} parent=1 // pred_check
      _
    $region19: #{tpu_custom_call.1} parent=1 // pred_check_branch
      %48 = sbr.rel (0) target = $region21
    $region20: #{tpu_custom_call.1} parent=1 // pred_region
      %s50 = ssub.s32 128, 128
      %51 = vsyncadd [#allocation4], %s50
      %s53 = sshll.u32 [#allocation7], 4
      %s54 = int_to_ptr.vmem [resolvable:$true] %s53
      %56 = dma.vmem_to_hbm [thread:$0]  %s54, 128, %s2, [#allocation4]
    $region21: #{tpu_custom_call.1} parent=1 // pred_fallthru
      _
    // Predicated region
    $region22: #{tpu_custom_call.1} parent=1 // pred_check
      _
    $region23: #{tpu_custom_call.1} parent=1 // pred_check_branch
      %58 = sbr.rel (0) target = $region25
    $region24: #{tpu_custom_call.1} parent=1 // pred_region
      %59 = dma.done [#allocation4], 128
    $region25: #{tpu_custom_call.1} parent=1 // pred_fallthru
      _
    %60 = vsyncpa [#allocation3], 1
    %61 = vsyncpa [#allocation6], 1
    %62 = vsyncpa [#allocation4], 1

</llo_original>
